<compile_context>
chip_gen: v7x
topology: tpu7x:2x2x1
jax: 0.10.0
libtpu: 0.0.40
codegen_flags: <defaults>
</compile_context>

<pallas_src>
import functools

import jax
import jax.numpy as jnp
from jax.experimental import pallas as pl
from jax.experimental.pallas import tpu as pltpu


def _contrastive_kernel(o1_ref, o2_ref, lbl_ref, out_ref, acc_ref,
                        *, margin, mode, block_b, steps):
    # grid = (parallel split, batch chunks); reduction runs over axis 1.
    c = pl.program_id(0)
    i = pl.program_id(1)

    @pl.when(i == 0)
    def _init():
        acc_ref[...] = jnp.zeros_like(acc_ref)

    # Label stays fully resident in VMEM (constant index_map); slice the rows
    # belonging to this grid step instead of DMA'ing a tiny block every step.
    row0 = (c * steps + i) * block_b
    if block_b % 8 == 0:
        row0 = pl.multiple_of(row0, 8)
    lbl = lbl_ref[pl.ds(row0, block_b), :].astype(jnp.float32)        # (TB, 1)

    # torch.pairwise_distance (eps=1e-6): L2 norm of (o1 - o2 + eps) over dim=1.
    diff = (o1_ref[...].astype(jnp.float32)
            - o2_ref[...].astype(jnp.float32) + 1e-6)                 # (TB, D)
    d2 = jnp.sum(diff * diff, axis=-1, keepdims=True)                 # (TB, 1)

    if mode == "maskVN":
        # only label * d^2 is needed -> skip the sqrt entirely.
        term = lbl * d2
    else:
        d = jnp.sqrt(d2)
        neg = (1.0 - lbl) * jnp.square(jnp.maximum(margin - d, 0.0))
        term = neg if mode == "maskVV" else lbl * d2 + neg            # reuse d2

    # Vector accumulator: cheap elementwise add per step; the cross-sublane
    # reduce happens once, in the finalize branch.
    acc_ref[...] = acc_ref[...] + term

    @pl.when(i == pl.num_programs(1) - 1)
    def _final():
        out_ref[0] = jnp.sum(acc_ref[...], axis=0, keepdims=True)     # per-split sum


def _vmem_capacity_bytes():
    """Per-TensorCore VMEM capacity; conservative (v7x-class) on failure."""
    try:
        return int(pltpu.get_tpu_info().vmem_capacity_bytes)
    except Exception:
        return 64 << 20


def _pick_block_b(B, D, itemsize, tile_byte_cap):
    """Largest batch tile that (a) divides B, (b) is a multiple of 8 (or the
    full batch), (c) fits tile_byte_cap bytes per input tile.  Among fitting
    candidates, prefer an even total step count (engages both v7x TensorCores)
    as long as that does not shrink the tile by more than 2x."""
    if B <= 8:
        return B
    rows_by_bytes = max(8, (tile_byte_cap // max(1, D * itemsize)) // 8 * 8)
    cap = min(rows_by_bytes, B)
    candidates = [bb for bb in range(8, cap + 1, 8) if B % bb == 0]
    if not candidates:
        return B  # fall back to a single full-batch block
    best = max(candidates)
    if (B // best) % 2 != 0:
        even = [bb for bb in candidates if (B // bb) % 2 == 0]
        if even:
            best_even = max(even)
            if 2 * best_even >= best:
                best = best_even
    return best


def contrastive_loss(output1, output2, label, *, margin=2.0,
                     maskVV=False, maskVN=False, block_b=None,
                     num_parallel=None):
    # mirrors: assert self.args.maskVV & self.args.maskVN != True
    assert not (maskVV and maskVN)

    B, D = output1.shape
    itemsize = jnp.dtype(output1.dtype).itemsize

    # Generation-aware budgets:
    #   v7x  : 64 MiB VMEM / TC  -> <= ~10 MiB per tile, scoped limit <= 48 MiB
    #   v5e/6e: 128 MiB VMEM      -> <= ~20 MiB per tile, scoped limit <= 96 MiB
    vmem_cap = _vmem_capacity_bytes()
    if vmem_cap >= (100 << 20):
        tile_byte_cap, vmem_clamp = 20 << 20, 96 << 20
    else:
        tile_byte_cap, vmem_clamp = 10 << 20, 48 << 20

    if block_b is None:
        block_b = _pick_block_b(B, D, itemsize, tile_byte_cap)
    assert B % block_b == 0
    assert block_b == B or block_b % 8 == 0, "block_b must be a multiple of 8"

    steps_total = B // block_b
    if num_parallel is None:
        # Two partial-sum streams -> both TensorCores on v7x; harmless on 1-TC chips.
        num_parallel = 2 if (steps_total >= 2 and steps_total % 2 == 0) else 1
    assert steps_total % num_parallel == 0
    steps = steps_total // num_parallel

    label2d = label.reshape(B, 1).astype(jnp.float32)
    mode = "maskVV" if maskVV else ("maskVN" if maskVN else "both")

    kernel = functools.partial(_contrastive_kernel, margin=float(margin),
                               mode=mode, block_b=block_b, steps=steps)

    # Explicit scoped-VMEM budget: 2 inputs x 2 pipeline buffers x tile, plus
    # the resident label, vector accumulator and slack, with 1.5x headroom.
    tile_bytes = block_b * D * itemsize
    vmem_need = 2 * 2 * tile_bytes + B * 4 + block_b * 4 + (1 << 12)
    vmem_limit = int(min(max(vmem_need + vmem_need // 2, 8 << 20),
                         max(vmem_clamp, vmem_need + (1 << 20))))

    cost = pl.CostEstimate(
        flops=4 * B * D + 8 * B,
        transcendentals=0 if maskVN else B,
        bytes_accessed=2 * B * D * itemsize + B * 4 + num_parallel * 4)

    def in_map(c, i):
        return (c * steps + i, 0)

    partials = pl.pallas_call(
        kernel,
        out_shape=jax.ShapeDtypeStruct((num_parallel, 1, 1), jnp.float32),
        grid_spec=pltpu.PrefetchScalarGridSpec(
            num_scalar_prefetch=0,
            grid=(num_parallel, steps),
            in_specs=[
                pl.BlockSpec((block_b, D), in_map),
                pl.BlockSpec((block_b, D), in_map),
                pl.BlockSpec((B, 1), lambda c, i: (0, 0)),   # label resident in VMEM
            ],
            out_specs=pl.BlockSpec((1, 1, 1), lambda c, i: (c, 0, 0)),
            scratch_shapes=[pltpu.VMEM((block_b, 1), jnp.float32)],
        ),
        compiler_params=pltpu.CompilerParams(
            dimension_semantics=("parallel", "arbitrary"),
            vmem_limit_bytes=vmem_limit),
        cost_estimate=cost,
    )(output1, output2, label2d)

    return jnp.sum(partials) / jnp.float32(B)


def _reference(output1, output2, label, margin=2.0, maskVV=False, maskVN=False):
    diff = output1.astype(jnp.float32) - output2.astype(jnp.float32) + 1e-6
    d = jnp.sqrt(jnp.sum(diff * diff, axis=-1))
    lbl = label.astype(jnp.float32)
    pos = lbl * d ** 2
    neg = (1.0 - lbl) * jnp.maximum(margin - d, 0.0) ** 2
    if maskVV:
        return jnp.mean(neg)
    if maskVN:
        return jnp.mean(pos)
    return jnp.mean(pos + neg)


if __name__ == "__main__":
    key = jax.random.PRNGKey(0)
    k1, k2, k3 = jax.random.split(key, 3)

    # Default path: B=64, D=32 -> block_b=32, 2-way split (1 step per split).
    B, D = 64, 32
    output1 = jax.random.normal(k1, (B, D), dtype=jnp.float32)
    output2 = jax.random.normal(k2, (B, D), dtype=jnp.float32)
    label = (jax.random.uniform(k3, (B,)) > 0.5).astype(jnp.float32)

    for maskVV, maskVN in [(False, False), (True, False), (False, True)]:
        loss = contrastive_loss(output1, output2, label, margin=2.0,
                                maskVV=maskVV, maskVN=maskVN)
        loss = jax.block_until_ready(loss)
        ref = _reference(output1, output2, label, margin=2.0,
                         maskVV=maskVV, maskVN=maskVN)
        assert jnp.allclose(loss, ref, rtol=1e-5, atol=1e-5), (maskVV, maskVN, loss, ref)

    # Forced multi-step pipelined path: block_b=16 -> 4 chunks, 2 splits x 2 steps.
    loss_ms = jax.block_until_ready(
        contrastive_loss(output1, output2, label, margin=2.0, block_b=16))
    ref_ms = _reference(output1, output2, label, margin=2.0)
    assert jnp.allclose(loss_ms, ref_ms, rtol=1e-5, atol=1e-5), (loss_ms, ref_ms)

    # bf16 inputs (halved HBM traffic; kernel upcasts to f32 internally).
    o1b = output1.astype(jnp.bfloat16)
    o2b = output2.astype(jnp.bfloat16)
    loss_bf = jax.block_until_ready(contrastive_loss(o1b, o2b, label, margin=2.0))
    ref_bf = _reference(o1b, o2b, label, margin=2.0)
    assert jnp.allclose(loss_bf, ref_bf, rtol=1e-4, atol=1e-4), (loss_bf, ref_bf)

    # Tiny-batch fallback path (single block, single split).
    Bs = 8
    o1s = jax.random.normal(k1, (Bs, D), dtype=jnp.float32)
    o2s = jax.random.normal(k2, (Bs, D), dtype=jnp.float32)
    lbls = (jax.random.uniform(k3, (Bs,)) > 0.5).astype(jnp.float32)
    loss_s = jax.block_until_ready(contrastive_loss(o1s, o2s, lbls, margin=2.0))
    ref_s = _reference(o1s, o2s, lbls, margin=2.0)
    assert jnp.allclose(loss_s, ref_s, rtol=1e-5, atol=1e-5), (loss_s, ref_s)

    print("KERNEL_OK")
</pallas_src>

<mosaic_0001>
module attributes {stable_mosaic.version = 11 : i64} {
  func.func @_contrastive_kernel(%arg0: i32, %arg1: i32, %arg2: memref<32x32xf32, #tpu.memory_space<vmem>>, %arg3: memref<32x32xf32, #tpu.memory_space<vmem>>, %arg4: memref<64x1xf32, #tpu.memory_space<vmem>>, %arg5: memref<1x1x1xf32, #tpu.memory_space<vmem>>, %arg6: memref<32x1xf32, #tpu.memory_space<vmem>>) attributes {dimension_semantics = [#tpu.dimension_semantics<parallel>, #tpu.dimension_semantics<arbitrary>], iteration_bounds = array<i64: 2, 1>, scalar_prefetch = 0 : i64, scratch_operands = 1 : i64, tpu.core_type = #tpu.core_type<tc>, window_params = [{transform_indices = @transform_0, window_bounds = array<i64: 32, 32>}, {transform_indices = @transform_1, window_bounds = array<i64: 32, 32>}, {pipeline_mode = #tpu.pipeline_mode<synchronous>, transform_indices = @transform_2, window_bounds = array<i64: 64, 1>}, {transform_indices = @transform_3, window_bounds = array<i64: 1, 1, 1>}]} {
    %c0_i32 = arith.constant 0 : i32
    %0 = arith.cmpi eq, %arg1, %c0_i32 : i32
    %1 = arith.extui %0 : i1 to i32
    %c0_i32_0 = arith.constant 0 : i32
    %2 = arith.cmpi ne, %1, %c0_i32_0 : i32
    scf.if %2 {
      %cst_15 = arith.constant 0.000000e+00 : f32
      %34 = vector.broadcast %cst_15 : f32 to vector<32x1xf32>
      %c0_16 = arith.constant 0 : index
      %c0_17 = arith.constant 0 : index
      %35 = vector.load %arg6[%c0_16, %c0_17] : memref<32x1xf32, #tpu.memory_space<vmem>>, vector<32x1xf32>
      tpu.vector_store %arg6[%c0_16, %c0_17], %34 {strides = array<i32>} : memref<32x1xf32, #tpu.memory_space<vmem>>, vector<32x1xf32>,
    } else {
    }
    %c1_i32 = arith.constant 1 : i32
    %3 = arith.muli %arg0, %c1_i32 : i32
    %4 = arith.addi %3, %arg1 : i32
    %c32_i32 = arith.constant 32 : i32
    %5 = arith.muli %4, %c32_i32 : i32
    %6 = tpu.assume_multiple %5, 8 : i32
    %7 = arith.index_cast %6 : i32 to index
    %c0 = arith.constant 0 : index
    %8 = vector.load %arg4[%7, %c0] : memref<64x1xf32, #tpu.memory_space<vmem>>, vector<32x1xf32>
    %c0_1 = arith.constant 0 : index
    %c0_2 = arith.constant 0 : index
    %9 = vector.load %arg2[%c0_1, %c0_2] : memref<32x32xf32, #tpu.memory_space<vmem>>, vector<32x32xf32>
    %c0_3 = arith.constant 0 : index
    %c0_4 = arith.constant 0 : index
    %10 = vector.load %arg3[%c0_3, %c0_4] : memref<32x32xf32, #tpu.memory_space<vmem>>, vector<32x32xf32>
    %11 = arith.subf %9, %10 : vector<32x32xf32>
    %cst = arith.constant 9.99999997E-7 : f32
    %12 = vector.broadcast %cst : f32 to vector<32x32xf32>
    %13 = arith.addf %11, %12 : vector<32x32xf32>
    %14 = arith.mulf %13, %13 : vector<32x32xf32>
    %cst_5 = arith.constant dense<0.000000e+00> : vector<32xf32>
    %15 = vector.multi_reduction <add>, %14, %cst_5 [1] : vector<32x32xf32> to vector<32xf32>
    %16 = vector.shape_cast %15 : vector<32xf32> to vector<32x1xf32>
    %17 = math.sqrt %16 : vector<32x1xf32>
    %cst_6 = arith.constant 1.000000e+00 : f32
    %18 = vector.broadcast %cst_6 : f32 to vector<32x1xf32>
    %19 = arith.subf %18, %8 : vector<32x1xf32>
    %cst_7 = arith.constant 2.000000e+00 : f32
    %20 = vector.broadcast %cst_7 : f32 to vector<32x1xf32>
    %21 = arith.subf %20, %17 : vector<32x1xf32>
    %cst_8 = arith.constant 0.000000e+00 : f32
    %22 = vector.broadcast %cst_8 : f32 to vector<32x1xf32>
    %23 = arith.maximumf %21, %22 : vector<32x1xf32>
    %24 = arith.mulf %23, %23 : vector<32x1xf32>
    %25 = arith.mulf %19, %24 : vector<32x1xf32>
    %26 = arith.mulf %8, %16 : vector<32x1xf32>
    %27 = arith.addf %26, %25 : vector<32x1xf32>
    %c0_9 = arith.constant 0 : index
    %c0_10 = arith.constant 0 : index
    %28 = vector.load %arg6[%c0_9, %c0_10] : memref<32x1xf32, #tpu.memory_space<vmem>>, vector<32x1xf32>
    %29 = arith.addf %28, %27 : vector<32x1xf32>
    %c0_11 = arith.constant 0 : index
    %c0_12 = arith.constant 0 : index
    %30 = vector.load %arg6[%c0_11, %c0_12] : memref<32x1xf32, #tpu.memory_space<vmem>>, vector<32x1xf32>
    tpu.vector_store %arg6[%c0_11, %c0_12], %29 {strides = array<i32>} : memref<32x1xf32, #tpu.memory_space<vmem>>, vector<32x1xf32>,
    %c0_i32_13 = arith.constant 0 : i32
    %31 = arith.cmpi eq, %arg1, %c0_i32_13 : i32
    %32 = arith.extui %31 : i1 to i32
    %c0_i32_14 = arith.constant 0 : i32
    %33 = arith.cmpi ne, %32, %c0_i32_14 : i32
    scf.if %33 {
      %c0_15 = arith.constant 0 : index
      %c0_16 = arith.constant 0 : index
      %34 = vector.load %arg6[%c0_15, %c0_16] : memref<32x1xf32, #tpu.memory_space<vmem>>, vector<32x1xf32>
      %cst_17 = arith.constant dense<0.000000e+00> : vector<1xf32>
      %35 = vector.multi_reduction <add>, %34, %cst_17 [0] : vector<32x1xf32> to vector<1xf32>
      %36 = vector.shape_cast %35 : vector<1xf32> to vector<1x1xf32>
      %c0_18 = arith.constant 0 : index
      %c0_19 = arith.constant 0 : index
      %c0_20 = arith.constant 0 : index
      %37 = vector.load %arg5[%c0_18, %c0_19, %c0_20] : memref<1x1x1xf32, #tpu.memory_space<vmem>>, vector<1x1x1xf32>
      %38 = vector.shape_cast %37 : vector<1x1x1xf32> to vector<1x1xf32>
      %39 = vector.shape_cast %36 : vector<1x1xf32> to vector<1x1x1xf32>
      tpu.vector_store %arg5[%c0_18, %c0_19, %c0_20], %39 {strides = array<i32>} : memref<1x1x1xf32, #tpu.memory_space<vmem>>, vector<1x1x1xf32>,
    } else {
    }
    return
  }
  func.func @transform_0(%arg0: i32, %arg1: i32) -> (i32, i32) {
    %c1_i32 = arith.constant 1 : i32
    %0 = arith.muli %arg0, %c1_i32 : i32
    %1 = arith.addi %0, %arg1 : i32
    %c0_i32 = arith.constant 0 : i32
    %c0_i32_0 = arith.constant 0 : i32
    return %1, %c0_i32 : i32, i32
  }
  func.func @transform_1(%arg0: i32, %arg1: i32) -> (i32, i32) {
    %c1_i32 = arith.constant 1 : i32
    %0 = arith.muli %arg0, %c1_i32 : i32
    %1 = arith.addi %0, %arg1 : i32
    %c0_i32 = arith.constant 0 : i32
    %c0_i32_0 = arith.constant 0 : i32
    return %1, %c0_i32 : i32, i32
  }
  func.func @transform_2(%arg0: i32, %arg1: i32) -> (i32, i32) {
    %c0_i32 = arith.constant 0 : i32
    %c0_i32_0 = arith.constant 0 : i32
    %c0_i32_1 = arith.constant 0 : i32
    return %c0_i32, %c0_i32_0 : i32, i32
  }
  func.func @transform_3(%arg0: i32, %arg1: i32) -> (i32, i32, i32) {
    %c0_i32 = arith.constant 0 : i32
    %c0_i32_0 = arith.constant 0 : i32
    %c0_i32_1 = arith.constant 0 : i32
    return %arg0, %c0_i32, %c0_i32_0 : i32, i32, i32
  }
}

</mosaic_0001>

<llo_original>
// kernel: tpu_custom_call.1
$region0: #{tpu_custom_call.1}
  #allocation0 [shape = 'u32[]', space=smem, size = 0x4, offset = 0x4, fixed_abs, tag = 'smem constant byte address 0x4 - core index']
  #allocation1 [shape = 'u32[144,128]{1,0:T(1,128)}', space=vmem, size = 0x12000, scoped, tag = 'internal scratch']
  #allocation2 [shape = 'f32[32,1]{1,0:T(8,128)}', space=vmem, size = 0x4000, scoped, tag = 'scratch operand']
  %s0 = inlined_call_operand.vmem [shape: f32[64,32], index: 0, kind: input, shape index: {}]
  %s1 = inlined_call_operand.vmem [shape: f32[64,32], index: 1, kind: input, shape index: {}]
  %s2 = inlined_call_operand.vmem [shape: f32[64,1], index: 2, kind: input, shape index: {}]
  %s3 = inlined_call_operand.vmem [shape: f32[2,1,1], index: 3, kind: output, shape index: {}]
  %s4 = sld [smem:[#allocation0]]
  $region53: #{tpu_custom_call.1} parent=0
    _
  %s6 = ssub.s32 1, %s4
  %s7 = scalar_select 0, %s6, %s4
  loop: start=0, step=1, limit=4
  $region2: #{tpu_custom_call.1} parent=0 // loop_pre_header
    _
  $region3: #{tpu_custom_call.1} parent=0 // loop_header
    %s9 = sphi 0, %s13
    %p10 = scmp.ge.s32.totalorder %s9, 4
    %s16 = sphi 0, %s28
    %s17 = sphi 0, %s24
    %s18 = sphi 0, %s16
    %s19 = sphi 0, %s17
    %s20 = sphi 0, %s18
    %s21 = sphi 0, %s19
    %s33 = sphi 0, %s35
    %s36 = sphi 0, %s33
    %s37 = sphi 0, %s36
    %s53 = sphi 0, %s37
    %s61 = sphi 0, %s63
    %s64 = sphi 0, %s61
    %s65 = sphi 0, %s64
    %s81 = sphi 0, %s65
    %s85 = sphi 0, %s85
    %s87 = sphi 0, %s85
    %s88 = sphi 0, %s87
    %s102 = sphi 0, %s88
    %s108 = sphi 0, %s110
    %s111 = sphi 0, %s108
    %s112 = sphi 0, %s111
    %s128 = sphi 0, %s112
  $region4: #{tpu_custom_call.1} parent=0 // loop_header_branch
    %12 = sbr.rel (%p10) target = $region8
  $region5: #{tpu_custom_call.1} parent=0 // loop_body
    %s14 = ssub.s32 %s9, 1
    %s15 = ssub.s32 %s9, 2
    %s22 = sadd.s32 1, %s17
    %p23 = scmp.ge.s32.totalorder %s22, 1
    %s24 = scalar_select %p23, 0, %s22
    %s25 = sadd.s32 1, %s16
    %s26 = scalar_select %p23, %s25, %s16
    %p27 = scmp.ge.s32.totalorder %s26, 2
    %s28 = scalar_select %p27, 0, %s26
    %s29 = sadd.s32 %s16, %s17
    %s30 = sadd.s32 %s28, %s24
    %s31 = ssub.s32 %s29, %s30
    %p32 = scmp.eq.s32.totalorder %s31, 0
    %s34 = sadd.s32 %s33, 1
    %s35 = scalar_select %p32, %s33, %s34
    %p38 = pneg %p32
    %p39 = scmp.eq.s32.totalorder %s9, 1
    %p40 = por %p38, %p39
    %p41 = scmp.ne.s32.totalorder %s33, %s36
    %p42 = scmp.eq.s32.totalorder %s9, 0
    %p43 = por %p41, %p42
    %p44 = scmp.ne.s32.totalorder %s33, %s36
    %p45 = scmp.eq.s32.totalorder %s14, 1
    %p46 = por %p44, %p45
    %p47 = scmp.ne.s32.totalorder %s36, %s37
    %p48 = scmp.eq.s32.totalorder %s14, 0
    %p49 = por %p47, %p48
    %p50 = scmp.ne.s32.totalorder %s36, %s37
    %p51 = scmp.eq.s32.totalorder %s15, 1
    %p52 = por %p50, %p51
    %p54 = scmp.ne.s32.totalorder %s37, %s53
    %p55 = scmp.eq.s32.totalorder %s15, 0
    %p56 = por %p54, %p55
    %s57 = sadd.s32 %s16, %s17
    %s58 = sadd.s32 %s28, %s24
    %s59 = ssub.s32 %s57, %s58
    %p60 = scmp.eq.s32.totalorder %s59, 0
    %s62 = sadd.s32 %s61, 1
    %s63 = scalar_select %p60, %s61, %s62
    %p66 = pneg %p60
    %p67 = scmp.eq.s32.totalorder %s9, 1
    %p68 = por %p66, %p67
    %p69 = scmp.ne.s32.totalorder %s61, %s64
    %p70 = scmp.eq.s32.totalorder %s9, 0
    %p71 = por %p69, %p70
    %p72 = scmp.ne.s32.totalorder %s61, %s64
    %p73 = scmp.eq.s32.totalorder %s14, 1
    %p74 = por %p72, %p73
    %p75 = scmp.ne.s32.totalorder %s64, %s65
    %p76 = scmp.eq.s32.totalorder %s14, 0
    %p77 = por %p75, %p76
    %p78 = scmp.ne.s32.totalorder %s64, %s65
    %p79 = scmp.eq.s32.totalorder %s15, 1
    %p80 = por %p78, %p79
    %p82 = scmp.ne.s32.totalorder %s65, %s81
    %p83 = scmp.eq.s32.totalorder %s15, 0
    %p84 = por %p82, %p83
    %s86 = sadd.s32 %s85, 1
    %p89 = scmp.eq.s32.totalorder %s9, 1
    %p90 = scmp.ne.s32.totalorder %s85, %s87
    %p91 = scmp.eq.s32.totalorder %s9, 0
    %p92 = por %p90, %p91
    %p93 = scmp.ne.s32.totalorder %s85, %s87
    %p94 = scmp.eq.s32.totalorder %s14, 1
    %p95 = por %p93, %p94
    %p96 = scmp.ne.s32.totalorder %s87, %s88
    %p97 = scmp.eq.s32.totalorder %s14, 0
    %p98 = por %p96, %p97
    %p99 = scmp.ne.s32.totalorder %s87, %s88
    %p100 = scmp.eq.s32.totalorder %s15, 1
    %p101 = por %p99, %p100
    %p103 = scmp.ne.s32.totalorder %s88, %s102
    %p104 = scmp.eq.s32.totalorder %s15, 0
    %p105 = por %p103, %p104
    %s106 = ssub.s32 %s16, %s28
    %p107 = scmp.eq.s32.totalorder %s106, 0
    %s109 = sadd.s32 %s108, 1
    %s110 = scalar_select %p107, %s108, %s109
    %p113 = pneg %p107
    %p114 = scmp.eq.s32.totalorder %s9, 1
    %p115 = por %p113, %p114
    %p116 = scmp.ne.s32.totalorder %s108, %s111
    %p117 = scmp.eq.s32.totalorder %s9, 0
    %p118 = por %p116, %p117
    %p119 = scmp.ne.s32.totalorder %s108, %s111
    %p120 = scmp.eq.s32.totalorder %s14, 1
    %p121 = por %p119, %p120
    %p122 = scmp.ne.s32.totalorder %s111, %s112
    %p123 = scmp.eq.s32.totalorder %s14, 0
    %p124 = por %p122, %p123
    %p125 = scmp.ne.s32.totalorder %s111, %s112
    %p126 = scmp.eq.s32.totalorder %s15, 1
    %p127 = por %p125, %p126
    %p129 = scmp.ne.s32.totalorder %s112, %s128
    %p130 = scmp.eq.s32.totalorder %s15, 0
    %p131 = por %p129, %p130
    %p132 = scmp.le.s32.totalorder 1, %s9
    %p133 = scmp.lt.s32.totalorder %s9, 3
    %p134 = pnand %p132, %p133
    %p135 = pneg %p134
    // Predicated region
    $region9: #{tpu_custom_call.1} parent=5 // pred_check
      _
    $region10: #{tpu_custom_call.1} parent=5 // pred_check_branch
      %137 = sbr.rel (%p134) target = $region12
    $region11: #{tpu_custom_call.1} parent=5 // pred_region
      %s138 = ssub.s32 %s9, 1
      // Predicated region
      $region13: #{tpu_custom_call.1} parent=11 // pred_check
        %p139 = pneg %p98
      $region14: #{tpu_custom_call.1} parent=11 // pred_check_branch
        %141 = sbr.rel (%p139) target = $region16
      $region15: #{tpu_custom_call.1} parent=11 // pred_region
        _
      $region16: #{tpu_custom_call.1} parent=11 // pred_fallthru
        _
    $region12: #{tpu_custom_call.1} parent=5 // pred_fallthru
      _
    %p142 = scmp.lt.s32.totalorder %s9, 2
    // Predicated region
    $region17: #{tpu_custom_call.1} parent=5 // pred_check
      %p143 = pneg %p142
    $region18: #{tpu_custom_call.1} parent=5 // pred_check_branch
      %145 = sbr.rel (%p143) target = $region20
    $region19: #{tpu_custom_call.1} parent=5 // pred_region
      // Predicated region
      $region21: #{tpu_custom_call.1} parent=19 // pred_check
        %p146 = pneg %p43
      $region22: #{tpu_custom_call.1} parent=19 // pred_check_branch
        %148 = sbr.rel (%p146) target = $region24
      $region23: #{tpu_custom_call.1} parent=19 // pred_region
        %s149 = sadd.s32 %s16, %s17
        %s150 = smul.u32 4, %s149
        %p151 = scmp.lt.s32.totalorder %s150, 7
        %s152 = scalar_select %p151, %s150, 7
        %s153 = smul.addr %s152, 8
        %s154 = scalar_lea.vmem %s0, %s153
        %s155 = sadd.s32 %s16, %s17
        %s156 = smul.u32 4, %s155
      $region24: #{tpu_custom_call.1} parent=19 // pred_fallthru
        _
      // Predicated region
      $region25: #{tpu_custom_call.1} parent=19 // pred_check
        %p157 = pneg %p71
      $region26: #{tpu_custom_call.1} parent=19 // pred_check_branch
        %159 = sbr.rel (%p157) target = $region28
      $region27: #{tpu_custom_call.1} parent=19 // pred_region
        %s160 = sadd.s32 %s16, %s17
        %s161 = smul.u32 4, %s160
        %p162 = scmp.lt.s32.totalorder %s161, 7
        %s163 = scalar_select %p162, %s161, 7
        %s164 = smul.addr %s163, 8
        %s165 = scalar_lea.vmem %s1, %s164
        %s166 = sadd.s32 %s16, %s17
        %s167 = smul.u32 4, %s166
      $region28: #{tpu_custom_call.1} parent=19 // pred_fallthru
        _
    $region20: #{tpu_custom_call.1} parent=5 // pred_fallthru
      _
    %p168 = scmp.le.s32.totalorder 1, %s9
    %p169 = scmp.lt.s32.totalorder %s9, 3
    %p170 = pnand %p168, %p169
    %p171 = pneg %p170
    // Predicated region
    $region29: #{tpu_custom_call.1} parent=5 // pred_check
      _
    $region30: #{tpu_custom_call.1} parent=5 // pred_check_branch
      %173 = sbr.rel (%p170) target = $region32
    $region31: #{tpu_custom_call.1} parent=5 // pred_region
      %s174 = ssub.s32 %s9, 1
      %s175 = sadd.s32 %s18, %s19
      %s176 = smul.u32 4, %s175
      %p177 = scmp.lt.s32.totalorder %s176, 7
      %s178 = scalar_select %p177, %s176, 7
      %s179 = smul.addr %s178, 8
      %s180 = scalar_lea.vmem %s0, %s179
      %p181 = pneg %p49
      %p182 = pneg %p46
      %s183 = sadd.s32 %s18, %s19
      %s184 = smul.u32 4, %s183
      %p185 = scmp.lt.s32.totalorder %s184, 7
      %s186 = scalar_select %p185, %s184, 7
      %s187 = smul.addr %s186, 8
      %s188 = scalar_lea.vmem %s1, %s187
      %p189 = pneg %p77
      %p190 = pneg %p74
      %p191 = pneg %p98
      %p192 = pneg %p95
      %p193 = pneg %p124
      %p194 = pneg %p121
      %p195 = scmp.lt.s32.totalorder %s18, 1
      %s196 = scalar_select %p195, %s18, 1
      %s197 = scalar_lea.vmem %s3, %s196
      %s198 = sadd.s32 %s18, %s19
      %s199 = smul.u32 4, %s198
      %p200 = scmp.lt.s32.totalorder %s199, 7
      %s201 = scalar_select %p200, %s199, 7
      %s202 = smul.addr %s201, 8
      %s203 = scalar_lea.vmem %s0, %s202
      %s204 = sadd.s32 %s18, %s19
      %s205 = smul.u32 4, %s204
      %s206 = sadd.s32 %s18, %s19
      %s207 = smul.u32 4, %s206
      %p208 = scmp.lt.s32.totalorder %s207, 7
      %s209 = scalar_select %p208, %s207, 7
      %s210 = smul.addr %s209, 8
      %s211 = scalar_lea.vmem %s1, %s210
      %s212 = sadd.s32 %s18, %s19
      %s213 = smul.u32 4, %s212
      %p214 = scmp.lt.s32.totalorder %s18, 1
      %s215 = scalar_select %p214, %s18, 1
      %s216 = scalar_lea.vmem %s3, %s215
      %p217 = scmp.eq.s32.totalorder %s19, 0
      // Predicated region
      $region33: #{tpu_custom_call.1} parent=31 // pred_check
        %p218 = pneg %p217
      $region34: #{tpu_custom_call.1} parent=31 // pred_check_branch
        %220 = sbr.rel (%p218) target = $region36
      $region35: #{tpu_custom_call.1} parent=31 // pred_region
        %vm221 = vcmask 7168
        %222 = vst.msk [vmem:[#allocation2] sm:$0xff] %vm221, 0.0
        %223 = vst.msk [vmem:[#allocation2 + $0x8] sm:$0xff] %vm221, 0.0
        %224 = vst.msk [vmem:[#allocation2 + $0x10] sm:$0xff] %vm221, 0.0
        %225 = vst.msk [vmem:[#allocation2 + $0x18] sm:$0xff] %vm221, 0.0
      $region36: #{tpu_custom_call.1} parent=31 // pred_fallthru
        _
      %s226 = sadd.s32 %s18, %s19
      %s227 = smul.u32 %s226, 32
      %s228 = scalar_lea.vmem %s2, %s227
      %v229 = vld [vmem:[%s228] sm:$0xff]
      %v230 = vld [vmem:[%s228 + $0x8] sm:$0xff]
      %v231 = vld [vmem:[%s228 + $0x10] sm:$0xff]
      %v232 = vld [vmem:[%s228 + $0x18] sm:$0xff]
      %v233 = vld [vmem:[%s203] sm:$0xff]
      %v234 = vld [vmem:[%s203 + $0x8] sm:$0xff]
      %v235 = vld [vmem:[%s203 + $0x10] sm:$0xff]
      %v236 = vld [vmem:[%s203 + $0x18] sm:$0xff]
      %v237 = vld [vmem:[%s211] sm:$0xff]
      %v238 = vld [vmem:[%s211 + $0x8] sm:$0xff]
      %v239 = vld [vmem:[%s211 + $0x10] sm:$0xff]
      %v240 = vld [vmem:[%s211 + $0x18] sm:$0xff]
      %v241 = vsub.f32 %v233, %v237
      %v242 = vsub.f32 %v234, %v238
      %v243 = vsub.f32 %v235, %v239
      %v244 = vsub.f32 %v236, %v240
      %v245 = vadd.f32 %v241, 1e-06
      %v246 = vadd.f32 %v242, 1e-06
      %v247 = vadd.f32 %v243, 1e-06
      %v248 = vadd.f32 %v244, 1e-06
      %v249 = vmul.f32 %v245, %v245
      %v250 = vmul.f32 %v246, %v246
      %v251 = vmul.f32 %v247, %v247
      %v252 = vmul.f32 %v248, %v248
      %vm253 = vcmask 261120
      %v254 = vsel %vm253, %v249, 0.0
      %255 = vadd.xlane.f32.xlu0 %v254
      %v256 = vpop.xlane.xlu0 %255
      %v257 = vsel %vm253, %v250, 0.0
      %258 = vadd.xlane.f32.xlu0 %v257
      %v259 = vpop.xlane.xlu0 %258
      %v260 = vsel %vm253, %v251, 0.0
      %261 = vadd.xlane.f32.xlu0 %v260
      %v262 = vpop.xlane.xlu0 %261
      %v263 = vsel %vm253, %v252, 0.0
      %264 = vadd.xlane.f32.xlu0 %v263
      %v265 = vpop.xlane.xlu0 %264
      %v266 = vrsqrt.pop %v256
      %v267 = vmul.f32 %v256, %v266
      %vm268 = vcmp.eq.f32.partialorder %v256, inf
      %v269 = vsel %vm268, %v256, %v267
      %vm270 = vcmp.eq.f32.partialorder %v256, 0.0
      %v271 = vand.u32 %v256, 2147483648
      %v272 = vsel %vm270, %v271, %v269
      %v273 = vrsqrt.pop %v259
      %v274 = vmul.f32 %v259, %v273
      %vm275 = vcmp.eq.f32.partialorder %v259, inf
      %v276 = vsel %vm275, %v259, %v274
      %vm277 = vcmp.eq.f32.partialorder %v259, 0.0
      %v278 = vand.u32 %v259, 2147483648
      %v279 = vsel %vm277, %v278, %v276
      %v280 = vrsqrt.pop %v262
      %v281 = vmul.f32 %v262, %v280
      %vm282 = vcmp.eq.f32.partialorder %v262, inf
      %v283 = vsel %vm282, %v262, %v281
      %vm284 = vcmp.eq.f32.partialorder %v262, 0.0
      %v285 = vand.u32 %v262, 2147483648
      %v286 = vsel %vm284, %v285, %v283
      %v287 = vrsqrt.pop %v265
      %v288 = vmul.f32 %v265, %v287
      %vm289 = vcmp.eq.f32.partialorder %v265, inf
      %v290 = vsel %vm289, %v265, %v288
      %vm291 = vcmp.eq.f32.partialorder %v265, 0.0
      %v292 = vand.u32 %v265, 2147483648
      %v293 = vsel %vm291, %v292, %v290
      %v294 = vsub.f32 1.0, %v229
      %v295 = vsub.f32 1.0, %v230
      %v296 = vsub.f32 1.0, %v231
      %v297 = vsub.f32 1.0, %v232
      %v298 = vsub.f32 2.0, %v272
      %v299 = vsub.f32 2.0, %v279
      %v300 = vsub.f32 2.0, %v286
      %v301 = vsub.f32 2.0, %v293
      %v302 = vmax.f32 %v298, 0.0
      %v303 = vmax.f32 %v299, 0.0
      %v304 = vmax.f32 %v300, 0.0
      %v305 = vmax.f32 %v301, 0.0
      %v306 = vmul.f32 %v302, %v302
      %v307 = vmul.f32 %v303, %v303
      %v308 = vmul.f32 %v304, %v304
      %v309 = vmul.f32 %v305, %v305
      %v310 = vmul.f32 %v294, %v306
      %v311 = vmul.f32 %v295, %v307
      %v312 = vmul.f32 %v296, %v308
      %v313 = vmul.f32 %v297, %v309
      %v314 = vmul.f32 %v229, %v256
      %v315 = vmul.f32 %v230, %v259
      %v316 = vmul.f32 %v231, %v262
      %v317 = vmul.f32 %v232, %v265
      %v318 = vadd.f32 %v314, %v310
      %v319 = vadd.f32 %v315, %v311
      %v320 = vadd.f32 %v316, %v312
      %v321 = vadd.f32 %v317, %v313
      %v322 = vld [vmem:[#allocation2] sm:$0xff]
      %v323 = vld [vmem:[#allocation2 + $0x8] sm:$0xff]
      %v324 = vld [vmem:[#allocation2 + $0x10] sm:$0xff]
      %v325 = vld [vmem:[#allocation2 + $0x18] sm:$0xff]
      %v326 = vadd.f32 %v322, %v318
      %v327 = vadd.f32 %v323, %v319
      %v328 = vadd.f32 %v324, %v320
      %v329 = vadd.f32 %v325, %v321
      %vm330 = vcmask 7168
      %331 = vst.msk [vmem:[#allocation2] sm:$0xff] %vm330, %v326
      %332 = vst.msk [vmem:[#allocation2 + $0x8] sm:$0xff] %vm330, %v327
      %333 = vst.msk [vmem:[#allocation2 + $0x10] sm:$0xff] %vm330, %v328
      %334 = vst.msk [vmem:[#allocation2 + $0x18] sm:$0xff] %vm330, %v329
      // Predicated region
      $region37: #{tpu_custom_call.1} parent=31 // pred_check
        %p335 = pneg %p217
      $region38: #{tpu_custom_call.1} parent=31 // pred_check_branch
        %337 = sbr.rel (%p335) target = $region40
      $region39: #{tpu_custom_call.1} parent=31 // pred_region
        %v338 = vld [vmem:[#allocation2] sm:$0xff]
        %v339 = vld [vmem:[#allocation2 + $0x8] sm:$0xff]
        %v340 = vld [vmem:[#allocation2 + $0x10] sm:$0xff]
        %v341 = vld [vmem:[#allocation2 + $0x18] sm:$0xff]
        %v342 = vsel %vm330, %v338, 0.0
        %v343 = vsel %vm330, %v339, 0.0
        %v344 = vadd.f32 %v342, %v343
        %v345 = vsel %vm330, %v340, 0.0
        %v346 = vadd.f32 %v344, %v345
        %v347 = vsel %vm330, %v341, 0.0
        %v348 = vadd.f32 %v346, %v347
        %v349 = vrot.slane %v348, 4
        %v350 = vadd.f32 %v348, %v349
        %v351 = vrot.slane %v350, 2
        %v352 = vadd.f32 %v350, %v351
        %v353 = vrot.slane %v352, 1
        %v354 = vadd.f32 %v352, %v353
        %vm355 = vcmask 0
        %356 = vst.msk [vmem:[%s216] sm:$0x1] %vm355, %v354
      $region40: #{tpu_custom_call.1} parent=31 // pred_fallthru
        _
      %p357 = scmp.lt.s32.totalorder %s18, 1
      %s358 = scalar_select %p357, %s18, 1
      %s359 = scalar_lea.vmem %s3, %s358
      // Predicated region
      $region41: #{tpu_custom_call.1} parent=31 // pred_check
        %p360 = pneg %p121
      $region42: #{tpu_custom_call.1} parent=31 // pred_check_branch
        %362 = sbr.rel (%p360) target = $region44
      $region43: #{tpu_custom_call.1} parent=31 // pred_region
        _
      $region44: #{tpu_custom_call.1} parent=31 // pred_fallthru
        _
    $region32: #{tpu_custom_call.1} parent=5 // pred_fallthru
      _
    %p363 = scmp.le.s32.totalorder 2, %s9
    // Predicated region
    $region45: #{tpu_custom_call.1} parent=5 // pred_check
      %p364 = pneg %p363
    $region46: #{tpu_custom_call.1} parent=5 // pred_check_branch
      %366 = sbr.rel (%p364) target = $region48
    $region47: #{tpu_custom_call.1} parent=5 // pred_region
      %s367 = ssub.s32 %s9, 2
      // Predicated region
      $region49: #{tpu_custom_call.1} parent=47 // pred_check
        %p368 = pneg %p127
      $region50: #{tpu_custom_call.1} parent=47 // pred_check_branch
        %370 = sbr.rel (%p368) target = $region52
      $region51: #{tpu_custom_call.1} parent=47 // pred_region
        %p371 = scmp.lt.s32.totalorder %s20, 1
        %s372 = scalar_select %p371, %s20, 1
        %s373 = scalar_lea.vmem %s3, %s372
      $region52: #{tpu_custom_call.1} parent=47 // pred_fallthru
        _
    $region48: #{tpu_custom_call.1} parent=5 // pred_fallthru
      _
  $region6: #{tpu_custom_call.1} parent=0 // loop_footer
    %s13 = sadd.s32 1, %s9
  $region7: #{tpu_custom_call.1} parent=0 // loop_footer_branch
    %8 = sbr.rel target = $region3
  $region8: #{tpu_custom_call.1} parent=0 // loop_exit
    _

</llo_original>
